<compile_context>
chip_gen: v6e
topology: v6e:2x2x1
jax: 0.10.0
libtpu: 0.0.40
codegen_flags: <defaults>
</compile_context>

<pallas_src>
import numpy as np
import jax
import jax.numpy as jnp
from jax.experimental import pallas as pl
from jax.experimental.pallas import tpu as pltpu

HIDDEN_SIZE = 32
INPUT_SIZE = 3
MEMORY_SIZE = 32
THETA = 512


# ----------------------------------------------------------------------------
# Parameter construction (plain JAX / numpy glue — deterministic, host-side)
# ----------------------------------------------------------------------------
def state_space_matrices(memory_size, theta):
    """Continuous-time LMU (A, B), discretized with ZOH (dt = 1.0)."""
    Q = np.arange(memory_size, dtype=np.float64).reshape(-1, 1)
    R = (2 * Q + 1) / theta
    i, j = np.meshgrid(Q, Q, indexing="ij")
    A = R * np.where(i < j, -1, (-1.0) ** (i - j + 1))      # [M, M]
    B = R * (-1.0) ** Q                                      # [M, 1]

    # ZOH discretization via the augmented-matrix exponential:
    #   expm([[A, B], [0, 0]] * dt) = [[Ad, Bd], [0, I]]
    m = memory_size
    aug = np.zeros((m + 1, m + 1), dtype=np.float64)
    aug[:m, :m] = A
    aug[:m, m:] = B
    aug_exp = np.asarray(
        jax.scipy.linalg.expm(jnp.asarray(aug, dtype=jnp.float32)),
        dtype=np.float64)
    Ad = aug_exp[:m, :m]
    Bd = aug_exp[:m, m:]
    return Ad.astype(np.float32), Bd.astype(np.float32)


def lecun_uniform(key, shape):
    fan_in = shape[-1]
    limit = np.sqrt(3.0 / fan_in)
    return jax.random.uniform(key, shape, jnp.float32, -limit, limit)


def xavier_normal(key, shape):
    fan_out, fan_in = shape  # PyTorch 2-D convention: [out, in]
    std = np.sqrt(2.0 / (fan_in + fan_out))
    return jax.random.normal(key, shape, jnp.float32) * std


def init_lmu_params(key):
    """Mirrors LMUCell.initParameters (psmnist=False)."""
    k1, k2, k3, k4, k5 = jax.random.split(key, 5)
    A, B = state_space_matrices(MEMORY_SIZE, THETA)
    params = dict(
        A=jnp.asarray(A),                                    # [M, M]
        B=jnp.asarray(B),                                    # [M, 1]
        e_x=lecun_uniform(k1, (1, INPUT_SIZE)),               # [1, I]
        e_h=lecun_uniform(k2, (1, HIDDEN_SIZE)),              # [1, H]
        e_m=jnp.zeros((1, MEMORY_SIZE), jnp.float32),         # [1, M]
        W_x=xavier_normal(k3, (HIDDEN_SIZE, INPUT_SIZE)),     # [H, I]
        W_h=xavier_normal(k4, (HIDDEN_SIZE, HIDDEN_SIZE)),    # [H, H]
        W_m=xavier_normal(k5, (HIDDEN_SIZE, MEMORY_SIZE)),    # [H, M]
    )
    return params


def pack_params(params):
    """One-time transposing / packing of parameters into kernel operands."""
    e_all = jnp.concatenate(
        [params["e_x"], params["e_h"], params["e_m"]], axis=-1)  # [1, I+H+M]
    return dict(
        e_all=e_all,                 # [1, I+H+M]  encoder row (VPU path)
        AT=params["A"].T,            # [M, M]
        B_row=params["B"].T,         # [1, M]      outer-product row (VPU path)
        WxT=params["W_x"].T,         # [I, H]
        WhT=params["W_h"].T,         # [H, H]
        WmT=params["W_m"].T,         # [M, H]
    )


# ----------------------------------------------------------------------------
# Pallas kernel: full recurrence over T timesteps, weights + state in VMEM
# ----------------------------------------------------------------------------
def _lmu_seq_kernel(x_ref, h0_ref, m0_ref,
                    e_all_ref, AT_ref, Brow_ref,
                    WxT_ref, WhT_ref, WmT_ref,
                    hm_out_ref,
                    h_scr, m_scr):
    t = pl.program_id(0)

    # Initialize the resident state from the provided (h0, m0) on step 0.
    @pl.when(t == 0)
    def _():
        h_scr[...] = h0_ref[...]
        m_scr[...] = m0_ref[...]

    x = x_ref[0]          # [B, I]  (current timestep, streamed)
    h = h_scr[...]        # [B, H]
    m = m_scr[...]        # [B, M]

    e_all = e_all_ref[...]                                        # [1, I+H+M]
    e_x = e_all[:, :INPUT_SIZE]
    e_h = e_all[:, INPUT_SIZE:INPUT_SIZE + HIDDEN_SIZE]
    e_m = e_all[:, INPUT_SIZE + HIDDEN_SIZE:]

    # u = x e_x^T + h e_h^T + m e_m^T  -> [B, 1]
    # (VPU multiply + lane reduction; no degenerate N=1 MXU matmuls.)
    u = (jnp.sum(x * e_x, axis=-1, keepdims=True)
         + jnp.sum(h * e_h, axis=-1, keepdims=True)
         + jnp.sum(m * e_m, axis=-1, keepdims=True))

    # m' = m A^T + u B^T  -> [B, M]   (u B^T is a broadcast outer product)
    m_new = (jnp.dot(m, AT_ref[...], preferred_element_type=jnp.float32)
             + u * Brow_ref[...])

    # h' = tanh(x W_x^T + h W_h^T + m' W_m^T)  -> [B, H]
    h_new = jnp.tanh(
        jnp.dot(x, WxT_ref[...], preferred_element_type=jnp.float32)
        + jnp.dot(h, WhT_ref[...], preferred_element_type=jnp.float32)
        + jnp.dot(m_new, WmT_ref[...], preferred_element_type=jnp.float32))

    # Carry the state to the next grid step.
    h_scr[...] = h_new
    m_scr[...] = m_new

    # Lane-packed per-step output: [B, H + M] in one store stream.
    hm_out_ref[0] = jnp.concatenate([h_new, m_new], axis=-1).astype(
        hm_out_ref.dtype)


@jax.jit
def lmu_sequence(packed, xs, h0, m0):
    """Run the LMU cell over a whole sequence in one pallas_call.

    xs: [T, B, I], h0: [B, H], m0: [B, M]
    Returns (h_seq [T, B, H], m_seq [T, B, M]).
    """
    T, B, _ = xs.shape
    HM = HIDDEN_SIZE + MEMORY_SIZE

    grid_spec = pltpu.PrefetchScalarGridSpec(
        num_scalar_prefetch=0,
        grid=(T,),
        in_specs=[
            # streamed per-timestep input
            pl.BlockSpec((1, B, INPUT_SIZE), lambda t: (t, 0, 0)),
            # initial state (constant block -> DMA'd once)
            pl.BlockSpec((B, HIDDEN_SIZE), lambda t: (0, 0)),
            pl.BlockSpec((B, MEMORY_SIZE), lambda t: (0, 0)),
            # weights (constant blocks -> resident in VMEM for the whole seq)
            pl.BlockSpec((1, INPUT_SIZE + HIDDEN_SIZE + MEMORY_SIZE),
                         lambda t: (0, 0)),                       # e_all
            pl.BlockSpec((MEMORY_SIZE, MEMORY_SIZE), lambda t: (0, 0)),  # A^T
            pl.BlockSpec((1, MEMORY_SIZE), lambda t: (0, 0)),            # B row
            pl.BlockSpec((INPUT_SIZE, HIDDEN_SIZE), lambda t: (0, 0)),   # W_x^T
            pl.BlockSpec((HIDDEN_SIZE, HIDDEN_SIZE), lambda t: (0, 0)),  # W_h^T
            pl.BlockSpec((MEMORY_SIZE, HIDDEN_SIZE), lambda t: (0, 0)),  # W_m^T
        ],
        out_specs=pl.BlockSpec((1, B, HM), lambda t: (t, 0, 0)),
        scratch_shapes=[
            pltpu.VMEM((B, HIDDEN_SIZE), jnp.float32),   # resident h state
            pltpu.VMEM((B, MEMORY_SIZE), jnp.float32),   # resident m state
        ],
    )

    hm = pl.pallas_call(
        _lmu_seq_kernel,
        out_shape=jax.ShapeDtypeStruct((T, B, HM), jnp.float32),
        grid_spec=grid_spec,
        compiler_params=pltpu.CompilerParams(
            dimension_semantics=("arbitrary",)),   # sequential recurrence
    )(xs, h0, m0,
      packed["e_all"], packed["AT"], packed["B_row"],
      packed["WxT"], packed["WhT"], packed["WmT"])

    h_seq = hm[..., :HIDDEN_SIZE]
    m_seq = hm[..., HIDDEN_SIZE:]
    return h_seq, m_seq


def lmu_cell_forward(packed, x, h, m):
    """One LMUCell step (exact LMUCell.forward semantics): x:[B,I] -> (h', m')."""
    h_seq, m_seq = lmu_sequence(packed, x[None], h, m)
    return h_seq[0], m_seq[0]


# ----------------------------------------------------------------------------
# Pure-JAX reference for correctness checks
# ----------------------------------------------------------------------------
def lmu_cell_ref(params, x, h, m):
    u = x @ params["e_x"].T + h @ params["e_h"].T + m @ params["e_m"].T
    m_new = m @ params["A"].T + u @ params["B"].T
    h_new = jnp.tanh(x @ params["W_x"].T + h @ params["W_h"].T
                     + m_new @ params["W_m"].T)
    return h_new, m_new


if __name__ == "__main__":
    key = jax.random.PRNGKey(0)
    k_params, k_x, k_h, k_m = jax.random.split(key, 4)

    params = init_lmu_params(k_params)
    packed = pack_params(params)          # all transposes / packing done once

    batch, seq_len = 8, 16
    xs = jax.random.normal(k_x, (seq_len, batch, INPUT_SIZE), jnp.float32)
    h0 = jax.random.normal(k_h, (batch, HIDDEN_SIZE), jnp.float32)
    m0 = jax.random.normal(k_m, (batch, MEMORY_SIZE), jnp.float32)

    # Fused-sequence kernel: one pallas_call for all timesteps.
    h_seq, m_seq = lmu_sequence(packed, xs, h0, m0)
    jax.block_until_ready((h_seq, m_seq))

    # Pure-JAX reference: scan of the single-cell step.
    def ref_step(carry, x):
        h, m = carry
        h2, m2 = lmu_cell_ref(params, x, h, m)
        return (h2, m2), (h2, m2)

    _, (h_ref_seq, m_ref_seq) = jax.lax.scan(ref_step, (h0, m0), xs)

    np.testing.assert_allclose(np.asarray(h_seq), np.asarray(h_ref_seq),
                               rtol=1e-4, atol=1e-4)
    np.testing.assert_allclose(np.asarray(m_seq), np.asarray(m_ref_seq),
                               rtol=1e-4, atol=1e-4)

    # Single-step path (the original module's forward signature).
    h1, m1 = lmu_cell_forward(packed, xs[0], h0, m0)
    jax.block_until_ready((h1, m1))
    h1_ref, m1_ref = lmu_cell_ref(params, xs[0], h0, m0)
    np.testing.assert_allclose(np.asarray(h1), np.asarray(h1_ref),
                               rtol=1e-5, atol=1e-5)
    np.testing.assert_allclose(np.asarray(m1), np.asarray(m1_ref),
                               rtol=1e-5, atol=1e-5)

    print("KERNEL_OK")
</pallas_src>

<mosaic_0001>
module attributes {stable_mosaic.version = 11 : i64} {
  func.func @_lmu_seq_kernel(%arg0: i32, %arg1: memref<1x8x3xf32, #tpu.memory_space<vmem>>, %arg2: memref<8x32xf32, #tpu.memory_space<vmem>>, %arg3: memref<8x32xf32, #tpu.memory_space<vmem>>, %arg4: memref<1x67xf32, #tpu.memory_space<vmem>>, %arg5: memref<32x32xf32, #tpu.memory_space<vmem>>, %arg6: memref<1x32xf32, #tpu.memory_space<vmem>>, %arg7: memref<3x32xf32, #tpu.memory_space<vmem>>, %arg8: memref<32x32xf32, #tpu.memory_space<vmem>>, %arg9: memref<32x32xf32, #tpu.memory_space<vmem>>, %arg10: memref<1x8x64xf32, #tpu.memory_space<vmem>>, %arg11: memref<8x32xf32, #tpu.memory_space<vmem>>, %arg12: memref<8x32xf32, #tpu.memory_space<vmem>>) attributes {dimension_semantics = [#tpu.dimension_semantics<arbitrary>], iteration_bounds = array<i64: 16>, scalar_prefetch = 0 : i64, scratch_operands = 2 : i64, tpu.core_type = #tpu.core_type<tc>, window_params = [{transform_indices = @transform_0, window_bounds = array<i64: 1, 8, 3>}, {pipeline_mode = #tpu.pipeline_mode<synchronous>, transform_indices = @transform_1, window_bounds = array<i64: 8, 32>}, {pipeline_mode = #tpu.pipeline_mode<synchronous>, transform_indices = @transform_2, window_bounds = array<i64: 8, 32>}, {pipeline_mode = #tpu.pipeline_mode<synchronous>, transform_indices = @transform_3, window_bounds = array<i64: 1, 67>}, {pipeline_mode = #tpu.pipeline_mode<synchronous>, transform_indices = @transform_4, window_bounds = array<i64: 32, 32>}, {pipeline_mode = #tpu.pipeline_mode<synchronous>, transform_indices = @transform_5, window_bounds = array<i64: 1, 32>}, {pipeline_mode = #tpu.pipeline_mode<synchronous>, transform_indices = @transform_6, window_bounds = array<i64: 3, 32>}, {pipeline_mode = #tpu.pipeline_mode<synchronous>, transform_indices = @transform_7, window_bounds = array<i64: 32, 32>}, {pipeline_mode = #tpu.pipeline_mode<synchronous>, transform_indices = @transform_8, window_bounds = array<i64: 32, 32>}, {transform_indices = @transform_9, window_bounds = array<i64: 1, 8, 64>}]} {
    %c0_i32 = arith.constant 0 : i32
    %0 = arith.cmpi eq, %arg0, %c0_i32 : i32
    %1 = arith.extui %0 : i1 to i32
    %c0_i32_0 = arith.constant 0 : i32
    %2 = arith.cmpi ne, %1, %c0_i32_0 : i32
    scf.if %2 {
      %c0_32 = arith.constant 0 : index
      %c0_33 = arith.constant 0 : index
      %47 = vector.load %arg2[%c0_32, %c0_33] : memref<8x32xf32, #tpu.memory_space<vmem>>, vector<8x32xf32>
      %c0_34 = arith.constant 0 : index
      %c0_35 = arith.constant 0 : index
      %48 = vector.load %arg11[%c0_34, %c0_35] : memref<8x32xf32, #tpu.memory_space<vmem>>, vector<8x32xf32>
      tpu.vector_store %arg11[%c0_34, %c0_35], %47 {strides = array<i32>} : memref<8x32xf32, #tpu.memory_space<vmem>>, vector<8x32xf32>,
      %c0_36 = arith.constant 0 : index
      %c0_37 = arith.constant 0 : index
      %49 = vector.load %arg3[%c0_36, %c0_37] : memref<8x32xf32, #tpu.memory_space<vmem>>, vector<8x32xf32>
      %c0_38 = arith.constant 0 : index
      %c0_39 = arith.constant 0 : index
      %50 = vector.load %arg12[%c0_38, %c0_39] : memref<8x32xf32, #tpu.memory_space<vmem>>, vector<8x32xf32>
      tpu.vector_store %arg12[%c0_38, %c0_39], %49 {strides = array<i32>} : memref<8x32xf32, #tpu.memory_space<vmem>>, vector<8x32xf32>,
    } else {
    }
    %c0 = arith.constant 0 : index
    %c0_1 = arith.constant 0 : index
    %c0_2 = arith.constant 0 : index
    %3 = vector.load %arg1[%c0, %c0_1, %c0_2] : memref<1x8x3xf32, #tpu.memory_space<vmem>>, vector<1x8x3xf32>
    %4 = vector.shape_cast %3 : vector<1x8x3xf32> to vector<8x3xf32>
    %c0_3 = arith.constant 0 : index
    %c0_4 = arith.constant 0 : index
    %5 = vector.load %arg11[%c0_3, %c0_4] : memref<8x32xf32, #tpu.memory_space<vmem>>, vector<8x32xf32>
    %c0_5 = arith.constant 0 : index
    %c0_6 = arith.constant 0 : index
    %6 = vector.load %arg12[%c0_5, %c0_6] : memref<8x32xf32, #tpu.memory_space<vmem>>, vector<8x32xf32>
    %c0_7 = arith.constant 0 : index
    %c0_8 = arith.constant 0 : index
    %7 = vector.load %arg4[%c0_7, %c0_8] : memref<1x67xf32, #tpu.memory_space<vmem>>, vector<1x67xf32>
    %8 = vector.extract_strided_slice %7 {offsets = [0, 0], sizes = [1, 3], strides = [1, 1]} : vector<1x67xf32> to vector<1x3xf32>
    %9 = vector.extract_strided_slice %7 {offsets = [0, 3], sizes = [1, 32], strides = [1, 1]} : vector<1x67xf32> to vector<1x32xf32>
    %10 = vector.extract_strided_slice %7 {offsets = [0, 35], sizes = [1, 32], strides = [1, 1]} : vector<1x67xf32> to vector<1x32xf32>
    %11 = vector.broadcast %8 : vector<1x3xf32> to vector<8x3xf32>
    %12 = arith.mulf %4, %11 : vector<8x3xf32>
    %cst = arith.constant dense<0.000000e+00> : vector<8xf32>
    %13 = vector.multi_reduction <add>, %12, %cst [1] : vector<8x3xf32> to vector<8xf32>
    %14 = vector.shape_cast %13 : vector<8xf32> to vector<8x1xf32>
    %15 = vector.broadcast %9 : vector<1x32xf32> to vector<8x32xf32>
    %16 = arith.mulf %5, %15 : vector<8x32xf32>
    %cst_9 = arith.constant dense<0.000000e+00> : vector<8xf32>
    %17 = vector.multi_reduction <add>, %16, %cst_9 [1] : vector<8x32xf32> to vector<8xf32>
    %18 = vector.shape_cast %17 : vector<8xf32> to vector<8x1xf32>
    %19 = arith.addf %14, %18 : vector<8x1xf32>
    %20 = vector.broadcast %10 : vector<1x32xf32> to vector<8x32xf32>
    %21 = arith.mulf %6, %20 : vector<8x32xf32>
    %cst_10 = arith.constant dense<0.000000e+00> : vector<8xf32>
    %22 = vector.multi_reduction <add>, %21, %cst_10 [1] : vector<8x32xf32> to vector<8xf32>
    %23 = vector.shape_cast %22 : vector<8xf32> to vector<8x1xf32>
    %24 = arith.addf %19, %23 : vector<8x1xf32>
    %c0_11 = arith.constant 0 : index
    %c0_12 = arith.constant 0 : index
    %25 = vector.load %arg5[%c0_11, %c0_12] : memref<32x32xf32, #tpu.memory_space<vmem>>, vector<32x32xf32>
    %cst_13 = arith.constant dense<0.000000e+00> : vector<8x32xf32>
    %26 = tpu.matmul %6, %25, %cst_13 {dimension_numbers = #tpu.dot_dimension_numbers<[1], [0], [0], [1], [0, 0, 1, 1], [], []>} : vector<8x32xf32>, vector<32x32xf32>, vector<8x32xf32> -> vector<8x32xf32>
    %c0_14 = arith.constant 0 : index
    %c0_15 = arith.constant 0 : index
    %27 = vector.load %arg6[%c0_14, %c0_15] : memref<1x32xf32, #tpu.memory_space<vmem>>, vector<1x32xf32>
    %28 = vector.broadcast %24 : vector<8x1xf32> to vector<8x32xf32>
    %29 = vector.broadcast %27 : vector<1x32xf32> to vector<8x32xf32>
    %30 = arith.mulf %28, %29 : vector<8x32xf32>
    %31 = arith.addf %26, %30 : vector<8x32xf32>
    %c0_16 = arith.constant 0 : index
    %c0_17 = arith.constant 0 : index
    %32 = vector.load %arg7[%c0_16, %c0_17] : memref<3x32xf32, #tpu.memory_space<vmem>>, vector<3x32xf32>
    %cst_18 = arith.constant dense<0.000000e+00> : vector<8x32xf32>
    %33 = tpu.matmul %4, %32, %cst_18 {dimension_numbers = #tpu.dot_dimension_numbers<[1], [0], [0], [1], [0, 0, 1, 1], [], []>} : vector<8x3xf32>, vector<3x32xf32>, vector<8x32xf32> -> vector<8x32xf32>
    %c0_19 = arith.constant 0 : index
    %c0_20 = arith.constant 0 : index
    %34 = vector.load %arg8[%c0_19, %c0_20] : memref<32x32xf32, #tpu.memory_space<vmem>>, vector<32x32xf32>
    %cst_21 = arith.constant dense<0.000000e+00> : vector<8x32xf32>
    %35 = tpu.matmul %5, %34, %cst_21 {dimension_numbers = #tpu.dot_dimension_numbers<[1], [0], [0], [1], [0, 0, 1, 1], [], []>} : vector<8x32xf32>, vector<32x32xf32>, vector<8x32xf32> -> vector<8x32xf32>
    %36 = arith.addf %33, %35 : vector<8x32xf32>
    %c0_22 = arith.constant 0 : index
    %c0_23 = arith.constant 0 : index
    %37 = vector.load %arg9[%c0_22, %c0_23] : memref<32x32xf32, #tpu.memory_space<vmem>>, vector<32x32xf32>
    %cst_24 = arith.constant dense<0.000000e+00> : vector<8x32xf32>
    %38 = tpu.matmul %31, %37, %cst_24 {dimension_numbers = #tpu.dot_dimension_numbers<[1], [0], [0], [1], [0, 0, 1, 1], [], []>} : vector<8x32xf32>, vector<32x32xf32>, vector<8x32xf32> -> vector<8x32xf32>
    %39 = arith.addf %36, %38 : vector<8x32xf32>
    %40 = math.tanh %39 : vector<8x32xf32>
    %c0_25 = arith.constant 0 : index
    %c0_26 = arith.constant 0 : index
    %41 = vector.load %arg11[%c0_25, %c0_26] : memref<8x32xf32, #tpu.memory_space<vmem>>, vector<8x32xf32>
    tpu.vector_store %arg11[%c0_25, %c0_26], %40 {strides = array<i32>} : memref<8x32xf32, #tpu.memory_space<vmem>>, vector<8x32xf32>,
    %c0_27 = arith.constant 0 : index
    %c0_28 = arith.constant 0 : index
    %42 = vector.load %arg12[%c0_27, %c0_28] : memref<8x32xf32, #tpu.memory_space<vmem>>, vector<8x32xf32>
    tpu.vector_store %arg12[%c0_27, %c0_28], %31 {strides = array<i32>} : memref<8x32xf32, #tpu.memory_space<vmem>>, vector<8x32xf32>,
    %43 = tpu.concatenate %40, %31 in 1 : vector<8x32xf32>, vector<8x32xf32> -> vector<8x64xf32>
    %c0_29 = arith.constant 0 : index
    %c0_30 = arith.constant 0 : index
    %c0_31 = arith.constant 0 : index
    %44 = vector.load %arg10[%c0_29, %c0_30, %c0_31] : memref<1x8x64xf32, #tpu.memory_space<vmem>>, vector<1x8x64xf32>
    %45 = vector.shape_cast %44 : vector<1x8x64xf32> to vector<8x64xf32>
    %46 = vector.shape_cast %43 : vector<8x64xf32> to vector<1x8x64xf32>
    tpu.vector_store %arg10[%c0_29, %c0_30, %c0_31], %46 {strides = array<i32>} : memref<1x8x64xf32, #tpu.memory_space<vmem>>, vector<1x8x64xf32>,
    return
  }
  func.func @transform_0(%arg0: i32) -> (i32, i32, i32) {
    %c0_i32 = arith.constant 0 : i32
    %c0_i32_0 = arith.constant 0 : i32
    %c0_i32_1 = arith.constant 0 : i32
    return %arg0, %c0_i32, %c0_i32_0 : i32, i32, i32
  }
  func.func @transform_1(%arg0: i32) -> (i32, i32) {
    %c0_i32 = arith.constant 0 : i32
    %c0_i32_0 = arith.constant 0 : i32
    %c0_i32_1 = arith.constant 0 : i32
    return %c0_i32, %c0_i32_0 : i32, i32
  }
  func.func @transform_2(%arg0: i32) -> (i32, i32) {
    %c0_i32 = arith.constant 0 : i32
    %c0_i32_0 = arith.constant 0 : i32
    %c0_i32_1 = arith.constant 0 : i32
    return %c0_i32, %c0_i32_0 : i32, i32
  }
  func.func @transform_3(%arg0: i32) -> (i32, i32) {
    %c0_i32 = arith.constant 0 : i32
    %c0_i32_0 = arith.constant 0 : i32
    %c0_i32_1 = arith.constant 0 : i32
    return %c0_i32, %c0_i32_0 : i32, i32
  }
  func.func @transform_4(%arg0: i32) -> (i32, i32) {
    %c0_i32 = arith.constant 0 : i32
    %c0_i32_0 = arith.constant 0 : i32
    %c0_i32_1 = arith.constant 0 : i32
    return %c0_i32, %c0_i32_0 : i32, i32
  }
  func.func @transform_5(%arg0: i32) -> (i32, i32) {
    %c0_i32 = arith.constant 0 : i32
    %c0_i32_0 = arith.constant 0 : i32
    %c0_i32_1 = arith.constant 0 : i32
    return %c0_i32, %c0_i32_0 : i32, i32
  }
  func.func @transform_6(%arg0: i32) -> (i32, i32) {
    %c0_i32 = arith.constant 0 : i32
    %c0_i32_0 = arith.constant 0 : i32
    %c0_i32_1 = arith.constant 0 : i32
    return %c0_i32, %c0_i32_0 : i32, i32
  }
  func.func @transform_7(%arg0: i32) -> (i32, i32) {
    %c0_i32 = arith.constant 0 : i32
    %c0_i32_0 = arith.constant 0 : i32
    %c0_i32_1 = arith.constant 0 : i32
    return %c0_i32, %c0_i32_0 : i32, i32
  }
  func.func @transform_8(%arg0: i32) -> (i32, i32) {
    %c0_i32 = arith.constant 0 : i32
    %c0_i32_0 = arith.constant 0 : i32
    %c0_i32_1 = arith.constant 0 : i32
    return %c0_i32, %c0_i32_0 : i32, i32
  }
  func.func @transform_9(%arg0: i32) -> (i32, i32, i32) {
    %c0_i32 = arith.constant 0 : i32
    %c0_i32_0 = arith.constant 0 : i32
    %c0_i32_1 = arith.constant 0 : i32
    return %arg0, %c0_i32, %c0_i32_0 : i32, i32, i32
  }
}

</mosaic_0001>

<llo_original>
// kernel: lmu_sequence.1
$region0: #{lmu_sequence.1}
  #allocation0 [shape = 'u32[]', space=smem, size = 0x4, offset = 0x4, fixed_abs, tag = 'smem constant byte address 0x4 - core index']
  #allocation1 [shape = 'u32[144,128]{1,0:T(1,128)}', space=vmem, size = 0x12000, scoped, tag = 'internal scratch']
  #allocation2 [shape = 'f32[8,32]{1,0:T(8,128)}', space=vmem, size = 0x1000, scoped, tag = 'scratch operand']
  #allocation3 [shape = 'f32[8,32]{1,0:T(8,128)}', space=vmem, size = 0x1000, scoped, tag = 'scratch operand']
  %s0 = inlined_call_operand.vmem [shape: f32[16,8,3], index: 0, kind: input, shape index: {}]
  %s1 = inlined_call_operand.vmem [shape: f32[8,32], index: 1, kind: input, shape index: {}]
  %s2 = inlined_call_operand.vmem [shape: f32[8,32], index: 2, kind: input, shape index: {}]
  %s3 = inlined_call_operand.vmem [shape: f32[1,67], index: 3, kind: input, shape index: {}]
  %s4 = inlined_call_operand.vmem [shape: f32[32,32], index: 4, kind: input, shape index: {}]
  %s5 = inlined_call_operand.vmem [shape: f32[1,32], index: 5, kind: input, shape index: {}]
  %s6 = inlined_call_operand.vmem [shape: f32[3,32], index: 6, kind: input, shape index: {}]
  %s7 = inlined_call_operand.vmem [shape: f32[32,32], index: 7, kind: input, shape index: {}]
  %s8 = inlined_call_operand.vmem [shape: f32[32,32], index: 8, kind: input, shape index: {}]
  %s9 = inlined_call_operand.vmem [shape: f32[16,8,64], index: 9, kind: output, shape index: {}]
  %s10 = sld [smem:[#allocation0]]
  $region73: #{lmu_sequence.1} parent=0
    _
  %s12 = ssub.s32 1, %s10
  %s13 = scalar_select 0, %s12, %s10
  loop: start=0, step=1, limit=18
  $region2: #{lmu_sequence.1} parent=0 // loop_pre_header
    _
  $region3: #{lmu_sequence.1} parent=0 // loop_header
    %s15 = sphi 0, %s19
    %p16 = scmp.ge.s32.totalorder %s15, 18
    %s25 = sphi 0, %s27
    %s28 = sphi 0, %s25
    %s29 = sphi 0, %s28
    %s45 = sphi 0, %s29
    %s49 = sphi 0, %s49
    %s51 = sphi 0, %s49
    %s52 = sphi 0, %s51
    %s66 = sphi 0, %s52
    %s70 = sphi 0, %s70
    %s72 = sphi 0, %s70
    %s73 = sphi 0, %s72
    %s87 = sphi 0, %s73
    %s91 = sphi 0, %s91
    %s93 = sphi 0, %s91
    %s94 = sphi 0, %s93
    %s108 = sphi 0, %s94
    %s112 = sphi 0, %s112
    %s114 = sphi 0, %s112
    %s115 = sphi 0, %s114
    %s129 = sphi 0, %s115
    %s133 = sphi 0, %s133
    %s135 = sphi 0, %s133
    %s136 = sphi 0, %s135
    %s150 = sphi 0, %s136
    %s154 = sphi 0, %s154
    %s156 = sphi 0, %s154
    %s157 = sphi 0, %s156
    %s171 = sphi 0, %s157
    %s175 = sphi 0, %s175
    %s177 = sphi 0, %s175
    %s178 = sphi 0, %s177
    %s192 = sphi 0, %s178
    %s196 = sphi 0, %s196
    %s198 = sphi 0, %s196
    %s199 = sphi 0, %s198
    %s213 = sphi 0, %s199
    %s219 = sphi 0, %s221
    %s222 = sphi 0, %s219
    %s223 = sphi 0, %s222
    %s239 = sphi 0, %s223
  $region4: #{lmu_sequence.1} parent=0 // loop_header_branch
    %18 = sbr.rel (%p16) target = $region8
  $region5: #{lmu_sequence.1} parent=0 // loop_body
    %s20 = ssub.s32 %s15, 1
    %s21 = ssub.s32 %s15, 2
    %s22 = sadd.s32 %s15, 1
    %s23 = ssub.s32 %s15, %s22
    %p24 = scmp.eq.s32.totalorder %s23, 0
    %s26 = sadd.s32 %s25, 1
    %s27 = scalar_select %p24, %s25, %s26
    %p30 = pneg %p24
    %p31 = scmp.eq.s32.totalorder %s15, 15
    %p32 = por %p30, %p31
    %p33 = scmp.ne.s32.totalorder %s25, %s28
    %p34 = scmp.eq.s32.totalorder %s15, 0
    %p35 = por %p33, %p34
    %p36 = scmp.ne.s32.totalorder %s25, %s28
    %p37 = scmp.eq.s32.totalorder %s20, 15
    %p38 = por %p36, %p37
    %p39 = scmp.ne.s32.totalorder %s28, %s29
    %p40 = scmp.eq.s32.totalorder %s20, 0
    %p41 = por %p39, %p40
    %p42 = scmp.ne.s32.totalorder %s28, %s29
    %p43 = scmp.eq.s32.totalorder %s21, 15
    %p44 = por %p42, %p43
    %p46 = scmp.ne.s32.totalorder %s29, %s45
    %p47 = scmp.eq.s32.totalorder %s21, 0
    %p48 = por %p46, %p47
    %s50 = sadd.s32 %s49, 1
    %p53 = scmp.eq.s32.totalorder %s15, 15
    %p54 = scmp.ne.s32.totalorder %s49, %s51
    %p55 = scmp.eq.s32.totalorder %s15, 0
    %p56 = por %p54, %p55
    %p57 = scmp.ne.s32.totalorder %s49, %s51
    %p58 = scmp.eq.s32.totalorder %s20, 15
    %p59 = por %p57, %p58
    %p60 = scmp.ne.s32.totalorder %s51, %s52
    %p61 = scmp.eq.s32.totalorder %s20, 0
    %p62 = por %p60, %p61
    %p63 = scmp.ne.s32.totalorder %s51, %s52
    %p64 = scmp.eq.s32.totalorder %s21, 15
    %p65 = por %p63, %p64
    %p67 = scmp.ne.s32.totalorder %s52, %s66
    %p68 = scmp.eq.s32.totalorder %s21, 0
    %p69 = por %p67, %p68
    %s71 = sadd.s32 %s70, 1
    %p74 = scmp.eq.s32.totalorder %s15, 15
    %p75 = scmp.ne.s32.totalorder %s70, %s72
    %p76 = scmp.eq.s32.totalorder %s15, 0
    %p77 = por %p75, %p76
    %p78 = scmp.ne.s32.totalorder %s70, %s72
    %p79 = scmp.eq.s32.totalorder %s20, 15
    %p80 = por %p78, %p79
    %p81 = scmp.ne.s32.totalorder %s72, %s73
    %p82 = scmp.eq.s32.totalorder %s20, 0
    %p83 = por %p81, %p82
    %p84 = scmp.ne.s32.totalorder %s72, %s73
    %p85 = scmp.eq.s32.totalorder %s21, 15
    %p86 = por %p84, %p85
    %p88 = scmp.ne.s32.totalorder %s73, %s87
    %p89 = scmp.eq.s32.totalorder %s21, 0
    %p90 = por %p88, %p89
    %s92 = sadd.s32 %s91, 1
    %p95 = scmp.eq.s32.totalorder %s15, 15
    %p96 = scmp.ne.s32.totalorder %s91, %s93
    %p97 = scmp.eq.s32.totalorder %s15, 0
    %p98 = por %p96, %p97
    %p99 = scmp.ne.s32.totalorder %s91, %s93
    %p100 = scmp.eq.s32.totalorder %s20, 15
    %p101 = por %p99, %p100
    %p102 = scmp.ne.s32.totalorder %s93, %s94
    %p103 = scmp.eq.s32.totalorder %s20, 0
    %p104 = por %p102, %p103
    %p105 = scmp.ne.s32.totalorder %s93, %s94
    %p106 = scmp.eq.s32.totalorder %s21, 15
    %p107 = por %p105, %p106
    %p109 = scmp.ne.s32.totalorder %s94, %s108
    %p110 = scmp.eq.s32.totalorder %s21, 0
    %p111 = por %p109, %p110
    %s113 = sadd.s32 %s112, 1
    %p116 = scmp.eq.s32.totalorder %s15, 15
    %p117 = scmp.ne.s32.totalorder %s112, %s114
    %p118 = scmp.eq.s32.totalorder %s15, 0
    %p119 = por %p117, %p118
    %p120 = scmp.ne.s32.totalorder %s112, %s114
    %p121 = scmp.eq.s32.totalorder %s20, 15
    %p122 = por %p120, %p121
    %p123 = scmp.ne.s32.totalorder %s114, %s115
    %p124 = scmp.eq.s32.totalorder %s20, 0
    %p125 = por %p123, %p124
    %p126 = scmp.ne.s32.totalorder %s114, %s115
    %p127 = scmp.eq.s32.totalorder %s21, 15
    %p128 = por %p126, %p127
    %p130 = scmp.ne.s32.totalorder %s115, %s129
    %p131 = scmp.eq.s32.totalorder %s21, 0
    %p132 = por %p130, %p131
    %s134 = sadd.s32 %s133, 1
    %p137 = scmp.eq.s32.totalorder %s15, 15
    %p138 = scmp.ne.s32.totalorder %s133, %s135
    %p139 = scmp.eq.s32.totalorder %s15, 0
    %p140 = por %p138, %p139
    %p141 = scmp.ne.s32.totalorder %s133, %s135
    %p142 = scmp.eq.s32.totalorder %s20, 15
    %p143 = por %p141, %p142
    %p144 = scmp.ne.s32.totalorder %s135, %s136
    %p145 = scmp.eq.s32.totalorder %s20, 0
    %p146 = por %p144, %p145
    %p147 = scmp.ne.s32.totalorder %s135, %s136
    %p148 = scmp.eq.s32.totalorder %s21, 15
    %p149 = por %p147, %p148
    %p151 = scmp.ne.s32.totalorder %s136, %s150
    %p152 = scmp.eq.s32.totalorder %s21, 0
    %p153 = por %p151, %p152
    %s155 = sadd.s32 %s154, 1
    %p158 = scmp.eq.s32.totalorder %s15, 15
    %p159 = scmp.ne.s32.totalorder %s154, %s156
    %p160 = scmp.eq.s32.totalorder %s15, 0
    %p161 = por %p159, %p160
    %p162 = scmp.ne.s32.totalorder %s154, %s156
    %p163 = scmp.eq.s32.totalorder %s20, 15
    %p164 = por %p162, %p163
    %p165 = scmp.ne.s32.totalorder %s156, %s157
    %p166 = scmp.eq.s32.totalorder %s20, 0
    %p167 = por %p165, %p166
    %p168 = scmp.ne.s32.totalorder %s156, %s157
    %p169 = scmp.eq.s32.totalorder %s21, 15
    %p170 = por %p168, %p169
    %p172 = scmp.ne.s32.totalorder %s157, %s171
    %p173 = scmp.eq.s32.totalorder %s21, 0
    %p174 = por %p172, %p173
    %s176 = sadd.s32 %s175, 1
    %p179 = scmp.eq.s32.totalorder %s15, 15
    %p180 = scmp.ne.s32.totalorder %s175, %s177
    %p181 = scmp.eq.s32.totalorder %s15, 0
    %p182 = por %p180, %p181
    %p183 = scmp.ne.s32.totalorder %s175, %s177
    %p184 = scmp.eq.s32.totalorder %s20, 15
    %p185 = por %p183, %p184
    %p186 = scmp.ne.s32.totalorder %s177, %s178
    %p187 = scmp.eq.s32.totalorder %s20, 0
    %p188 = por %p186, %p187
    %p189 = scmp.ne.s32.totalorder %s177, %s178
    %p190 = scmp.eq.s32.totalorder %s21, 15
    %p191 = por %p189, %p190
    %p193 = scmp.ne.s32.totalorder %s178, %s192
    %p194 = scmp.eq.s32.totalorder %s21, 0
    %p195 = por %p193, %p194
    %s197 = sadd.s32 %s196, 1
    %p200 = scmp.eq.s32.totalorder %s15, 15
    %p201 = scmp.ne.s32.totalorder %s196, %s198
    %p202 = scmp.eq.s32.totalorder %s15, 0
    %p203 = por %p201, %p202
    %p204 = scmp.ne.s32.totalorder %s196, %s198
    %p205 = scmp.eq.s32.totalorder %s20, 15
    %p206 = por %p204, %p205
    %p207 = scmp.ne.s32.totalorder %s198, %s199
    %p208 = scmp.eq.s32.totalorder %s20, 0
    %p209 = por %p207, %p208
    %p210 = scmp.ne.s32.totalorder %s198, %s199
    %p211 = scmp.eq.s32.totalorder %s21, 15
    %p212 = por %p210, %p211
    %p214 = scmp.ne.s32.totalorder %s199, %s213
    %p215 = scmp.eq.s32.totalorder %s21, 0
    %p216 = por %p214, %p215
    %s217 = ssub.s32 %s15, %s22
    %p218 = scmp.eq.s32.totalorder %s217, 0
    %s220 = sadd.s32 %s219, 1
    %s221 = scalar_select %p218, %s219, %s220
    %p224 = pneg %p218
    %p225 = scmp.eq.s32.totalorder %s15, 15
    %p226 = por %p224, %p225
    %p227 = scmp.ne.s32.totalorder %s219, %s222
    %p228 = scmp.eq.s32.totalorder %s15, 0
    %p229 = por %p227, %p228
    %p230 = scmp.ne.s32.totalorder %s219, %s222
    %p231 = scmp.eq.s32.totalorder %s20, 15
    %p232 = por %p230, %p231
    %p233 = scmp.ne.s32.totalorder %s222, %s223
    %p234 = scmp.eq.s32.totalorder %s20, 0
    %p235 = por %p233, %p234
    %p236 = scmp.ne.s32.totalorder %s222, %s223
    %p237 = scmp.eq.s32.totalorder %s21, 15
    %p238 = por %p236, %p237
    %p240 = scmp.ne.s32.totalorder %s223, %s239
    %p241 = scmp.eq.s32.totalorder %s21, 0
    %p242 = por %p240, %p241
    %p243 = scmp.le.s32.totalorder 1, %s15
    %p244 = scmp.lt.s32.totalorder %s15, 17
    %p245 = pnand %p243, %p244
    %p246 = pneg %p245
    // Predicated region
    $region9: #{lmu_sequence.1} parent=5 // pred_check
      _
    $region10: #{lmu_sequence.1} parent=5 // pred_check_branch
      %248 = sbr.rel (%p245) target = $region12
    $region11: #{lmu_sequence.1} parent=5 // pred_region
      %s249 = ssub.s32 %s15, 1
      // Predicated region
      $region13: #{lmu_sequence.1} parent=11 // pred_check
        %p250 = pneg %p62
      $region14: #{lmu_sequence.1} parent=11 // pred_check_branch
        %252 = sbr.rel (%p250) target = $region16
      $region15: #{lmu_sequence.1} parent=11 // pred_region
        _
      $region16: #{lmu_sequence.1} parent=11 // pred_fallthru
        _
      // Predicated region
      $region17: #{lmu_sequence.1} parent=11 // pred_check
        %p253 = pneg %p83
      $region18: #{lmu_sequence.1} parent=11 // pred_check_branch
        %255 = sbr.rel (%p253) target = $region20
      $region19: #{lmu_sequence.1} parent=11 // pred_region
        _
      $region20: #{lmu_sequence.1} parent=11 // pred_fallthru
        _
      // Predicated region
      $region21: #{lmu_sequence.1} parent=11 // pred_check
        %p256 = pneg %p104
      $region22: #{lmu_sequence.1} parent=11 // pred_check_branch
        %258 = sbr.rel (%p256) target = $region24
      $region23: #{lmu_sequence.1} parent=11 // pred_region
        _
      $region24: #{lmu_sequence.1} parent=11 // pred_fallthru
        _
      // Predicated region
      $region25: #{lmu_sequence.1} parent=11 // pred_check
        %p259 = pneg %p125
      $region26: #{lmu_sequence.1} parent=11 // pred_check_branch
        %261 = sbr.rel (%p259) target = $region28
      $region27: #{lmu_sequence.1} parent=11 // pred_region
        _
      $region28: #{lmu_sequence.1} parent=11 // pred_fallthru
        _
      // Predicated region
      $region29: #{lmu_sequence.1} parent=11 // pred_check
        %p262 = pneg %p146
      $region30: #{lmu_sequence.1} parent=11 // pred_check_branch
        %264 = sbr.rel (%p262) target = $region32
      $region31: #{lmu_sequence.1} parent=11 // pred_region
        _
      $region32: #{lmu_sequence.1} parent=11 // pred_fallthru
        _
      // Predicated region
      $region33: #{lmu_sequence.1} parent=11 // pred_check
        %p265 = pneg %p167
      $region34: #{lmu_sequence.1} parent=11 // pred_check_branch
        %267 = sbr.rel (%p265) target = $region36
      $region35: #{lmu_sequence.1} parent=11 // pred_region
        _
      $region36: #{lmu_sequence.1} parent=11 // pred_fallthru
        _
      // Predicated region
      $region37: #{lmu_sequence.1} parent=11 // pred_check
        %p268 = pneg %p188
      $region38: #{lmu_sequence.1} parent=11 // pred_check_branch
        %270 = sbr.rel (%p268) target = $region40
      $region39: #{lmu_sequence.1} parent=11 // pred_region
        _
      $region40: #{lmu_sequence.1} parent=11 // pred_fallthru
        _
      // Predicated region
      $region41: #{lmu_sequence.1} parent=11 // pred_check
        %p271 = pneg %p209
      $region42: #{lmu_sequence.1} parent=11 // pred_check_branch
        %273 = sbr.rel (%p271) target = $region44
      $region43: #{lmu_sequence.1} parent=11 // pred_region
        _
      $region44: #{lmu_sequence.1} parent=11 // pred_fallthru
        _
    $region12: #{lmu_sequence.1} parent=5 // pred_fallthru
      _
    %p274 = scmp.lt.s32.totalorder %s15, 16
    // Predicated region
    $region45: #{lmu_sequence.1} parent=5 // pred_check
      %p275 = pneg %p274
    $region46: #{lmu_sequence.1} parent=5 // pred_check_branch
      %277 = sbr.rel (%p275) target = $region48
    $region47: #{lmu_sequence.1} parent=5 // pred_region
      // Predicated region
      $region49: #{lmu_sequence.1} parent=47 // pred_check
        %p278 = pneg %p35
      $region50: #{lmu_sequence.1} parent=47 // pred_check_branch
        %280 = sbr.rel (%p278) target = $region52
      $region51: #{lmu_sequence.1} parent=47 // pred_region
        %p281 = scmp.lt.s32.totalorder %s15, 15
        %s282 = scalar_select %p281, %s15, 15
        %s283 = smul.addr %s282, 8
        %s284 = scalar_lea.vmem %s0, %s283
      $region52: #{lmu_sequence.1} parent=47 // pred_fallthru
        _
    $region48: #{lmu_sequence.1} parent=5 // pred_fallthru
      _
    %p285 = scmp.le.s32.totalorder 1, %s15
    %p286 = scmp.lt.s32.totalorder %s15, 17
    %p287 = pnand %p285, %p286
    %p288 = pneg %p287
    // Predicated region
    $region53: #{lmu_sequence.1} parent=5 // pred_check
      _
    $region54: #{lmu_sequence.1} parent=5 // pred_check_branch
      %290 = sbr.rel (%p287) target = $region56
    $region55: #{lmu_sequence.1} parent=5 // pred_region
      %s291 = ssub.s32 %s15, 1
      %p292 = scmp.lt.s32.totalorder %s20, 15
      %s293 = scalar_select %p292, %s20, 15
      %s294 = smul.addr %s293, 8
      %s295 = scalar_lea.vmem %s0, %s294
      %p296 = pneg %p41
      %p297 = pneg %p38
      %p298 = pneg %p62
      %p299 = pneg %p59
      %p300 = pneg %p83
      %p301 = pneg %p80
      %p302 = pneg %p104
      %p303 = pneg %p101
      %p304 = pneg %p125
      %p305 = pneg %p122
      %p306 = pneg %p146
      %p307 = pneg %p143
      %p308 = pneg %p167
      %p309 = pneg %p164
      %p310 = pneg %p188
      %p311 = pneg %p185
      %p312 = pneg %p209
      %p313 = pneg %p206
      %p314 = pneg %p235
      %p315 = pneg %p232
      %p316 = scmp.lt.s32.totalorder %s20, 15
      %s317 = scalar_select %p316, %s20, 15
      %s318 = smul.addr %s317, 8
      %s319 = scalar_lea.vmem %s9, %s318
      %p320 = scmp.lt.s32.totalorder %s20, 15
      %s321 = scalar_select %p320, %s20, 15
      %s322 = smul.addr %s321, 8
      %s323 = scalar_lea.vmem %s0, %s322
      %p324 = scmp.lt.s32.totalorder %s20, 15
      %s325 = scalar_select %p324, %s20, 15
      %s326 = smul.addr %s325, 8
      %s327 = scalar_lea.vmem %s9, %s326
      %p328 = scmp.eq.s32.totalorder %s20, 0
      // Predicated region
      $region57: #{lmu_sequence.1} parent=55 // pred_check
        %p329 = pneg %p328
      $region58: #{lmu_sequence.1} parent=55 // pred_check_branch
        %331 = sbr.rel (%p329) target = $region60
      $region59: #{lmu_sequence.1} parent=55 // pred_region
        %v332 = vld [vmem:[%s1] sm:$0xff]
        %vm333 = vcmask 261120
        %334 = vst.msk [vmem:[#allocation2] sm:$0xff] %vm333, %v332
        %v335 = vld [vmem:[%s2] sm:$0xff]
        %336 = vst.msk [vmem:[#allocation3] sm:$0xff] %vm333, %v335
      $region60: #{lmu_sequence.1} parent=55 // pred_fallthru
        _
      %v337 = vld [vmem:[%s323] sm:$0xff]
      %v338 = vld [vmem:[#allocation2] sm:$0xff]
      %v339 = vld [vmem:[#allocation3] sm:$0xff]
      %v340 = vld [vmem:[%s3] sm:$0x1]
      %v342 = vlaneseq
      %v343 = vshrl.u32 %v342, 7
      %v344 = vsub.s32 0, %v343
      %v345 = vrot.slane %v340, %v344
      %v347 = vmul.f32 %v337, %v345
      %vm348 = vcmask 23552
      %v349 = vsel %vm348, %v347, 0.0
      %350 = vadd.xlane.f32.xlu0 %v349
      %v351 = vpop.xlane.xlu0 %350
      %352 = vrot.lane.b32.xlu0 %v345, 125
      %v353 = vpop.permute.xlu0 %352
      %v355 = vmul.f32 %v338, %v353
      %vm356 = vcmask 261120
      %v357 = vsel %vm356, %v355, 0.0
      %358 = vadd.xlane.f32.xlu0 %v357
      %v359 = vpop.xlane.xlu0 %358
      %v360 = vadd.f32 %v351, %v359
      %361 = vrot.lane.b32.xlu0 %v345, 93
      %v362 = vpop.permute.xlu0 %361
      %v364 = vmul.f32 %v339, %v362
      %v365 = vsel %vm356, %v364, 0.0
      %366 = vadd.xlane.f32.xlu0 %v365
      %v367 = vpop.xlane.xlu0 %366
      %v368 = vadd.f32 %v360, %v367
      %v369 = vld [vmem:[%s4] sm:$0xff]
      %v370 = vld [vmem:[%s4 + $0x8] sm:$0xff]
      %v371 = vld [vmem:[%s4 + $0x10] sm:$0xff]
      %v372 = vld [vmem:[%s4 + $0x18] sm:$0xff]
      %v373 = vld [vmem:[%s5] sm:$0x1]
      %v375 = vlaneseq
      %v376 = vshrl.u32 %v375, 7
      %v377 = vsub.s32 0, %v376
      %v378 = vrot.slane %v373, %v377
      %v380 = vmul.f32 %v368, %v378
      %v382 = vsel %vm356, %v339, 0
      %384 = vmatprep.subr.mxu0 0.0
      %385 = vmatpush1.msra.mxu0 0.0
      %386 = vmatprep.subr.mxu0 0.0
      %387 = vmatpush1.msra.mxu0 0.0
      %388 = vmatprep.subr.mxu0 0.0
      %389 = vmatpush1.msra.mxu0 0.0
      %390 = vmatprep.subr.mxu0 0.0
      %391 = vmatpush1.msra.mxu0 0.0
      %392 = vmatprep.subr.mxu0 0.0
      %393 = vmatpush1.msra.mxu0 0.0
      %394 = vmatprep.subr.mxu0 0.0
      %395 = vmatpush1.msra.mxu0 0.0
      %396 = vmatprep.subr.mxu0 0.0
      %397 = vmatpush1.msra.mxu0 0.0
      %398 = vmatprep.subr.mxu0 0.0
      %399 = vmatpush1.msra.mxu0 0.0
      %400 = vmatprep.subr.mxu0 0.0
      %401 = vmatpush1.msra.mxu0 0.0
      %402 = vmatprep.subr.mxu0 0.0
      %403 = vmatpush1.msra.mxu0 0.0
      %404 = vmatprep.subr.mxu0 0.0
      %405 = vmatpush1.msra.mxu0 0.0
      %406 = vmatprep.subr.mxu0 0.0
      %407 = vmatpush1.msra.mxu0 0.0
      %408 = vmatprep.subr.mxu0 0.0
      %409 = vmatpush1.msra.mxu0 %v372
      %410 = vmatprep.subr.mxu0 0.0
      %411 = vmatpush1.msra.mxu0 %v371
      %412 = vmatprep.subr.mxu0 0.0
      %413 = vmatpush1.msra.mxu0 %v370
      %414 = vmatprep.subr.mxu0 0.0
      %415 = vmatpush1.msra.mxu0 %v369
      %416 = vmatprep.subr.mxu0 0.0
      %417 = vmatpush2.msra.mxu0 0.0
      %418 = vmatprep.subr.mxu0 0.0
      %419 = vmatpush2.msra.mxu0 0.0
      %420 = vmatprep.subr.mxu0 0.0
      %421 = vmatpush2.msra.mxu0 0.0
      %422 = vmatprep.subr.mxu0 0.0
      %423 = vmatpush2.msra.mxu0 0.0
      %424 = vmatprep.subr.mxu0 0.0
      %425 = vmatpush2.msra.mxu0 0.0
      %426 = vmatprep.subr.mxu0 0.0
      %427 = vmatpush2.msra.mxu0 0.0
      %428 = vmatprep.subr.mxu0 0.0
      %429 = vmatpush2.msra.mxu0 0.0
      %430 = vmatprep.subr.mxu0 0.0
      %431 = vmatpush2.msra.mxu0 0.0
      %432 = vmatprep.subr.mxu0 0.0
      %433 = vmatpush2.msra.mxu0 0.0
      %434 = vmatprep.subr.mxu0 0.0
      %435 = vmatpush2.msra.mxu0 0.0
      %436 = vmatprep.subr.mxu0 0.0
      %437 = vmatpush2.msra.mxu0 0.0
      %438 = vmatprep.subr.mxu0 0.0
      %439 = vmatpush2.msra.mxu0 0.0
      %440 = vmatprep.subr.mxu0 0.0
      %441 = vmatpush2.msra.mxu0 0.0
      %442 = vmatprep.subr.mxu0 0.0
      %443 = vmatpush2.msra.mxu0 0.0
      %444 = vmatprep.subr.mxu0 0.0
      %445 = vmatpush2.msra.mxu0 0.0
      %446 = vmatprep.subr.mxu0 0.0
      %447 = vmatpush2.msra.mxu0 0.0
      %448 = vmatprep.mubr.f32.mxu0 0.0
      %449 = vmatmul.mubr.f32.gmra.mxu0 %v382
      %v450 = vpop.f32.mrf.mxu0
      %v451 = vadd.f32 %v380, %v450
      %v452 = vpop.f32.mrf.mxu0
      %453 = vdwg.mxu0
      %v454 = vld [vmem:[%s6] sm:$0x7]
      %v455 = vld [vmem:[%s7] sm:$0xff]
      %v456 = vld [vmem:[%s7 + $0x8] sm:$0xff]
      %v457 = vld [vmem:[%s7 + $0x10] sm:$0xff]
      %v458 = vld [vmem:[%s7 + $0x18] sm:$0xff]
      %v460 = vsel %vm356, %v338, 0
      %462 = vmatprep.subr.mxu0 0.0
      %463 = vmatpush1.msra.mxu0 0.0
      %464 = vmatprep.subr.mxu0 0.0
      %465 = vmatpush1.msra.mxu0 0.0
      %466 = vmatprep.subr.mxu0 0.0
      %467 = vmatpush1.msra.mxu0 0.0
      %468 = vmatprep.subr.mxu0 0.0
      %469 = vmatpush1.msra.mxu0 0.0
      %470 = vmatprep.subr.mxu0 0.0
      %471 = vmatpush1.msra.mxu0 0.0
      %472 = vmatprep.subr.mxu0 0.0
      %473 = vmatpush1.msra.mxu0 0.0
      %474 = vmatprep.subr.mxu0 0.0
      %475 = vmatpush1.msra.mxu0 0.0
      %476 = vmatprep.subr.mxu0 0.0
      %477 = vmatpush1.msra.mxu0 0.0
      %478 = vmatprep.subr.mxu0 0.0
      %479 = vmatpush1.msra.mxu0 0.0
      %480 = vmatprep.subr.mxu0 0.0
      %481 = vmatpush1.msra.mxu0 0.0
      %482 = vmatprep.subr.mxu0 0.0
      %483 = vmatpush1.msra.mxu0 0.0
      %484 = vmatprep.subr.mxu0 0.0
      %485 = vmatpush1.msra.mxu0 0.0
      %486 = vmatprep.subr.mxu0 0.0
      %487 = vmatpush1.msra.mxu0 %v458
      %488 = vmatprep.subr.mxu0 0.0
      %489 = vmatpush1.msra.mxu0 %v457
      %490 = vmatprep.subr.mxu0 0.0
      %491 = vmatpush1.msra.mxu0 %v456
      %492 = vmatprep.subr.mxu0 0.0
      %493 = vmatpush1.msra.mxu0 %v455
      %494 = vmatprep.subr.mxu0 0.0
      %495 = vmatpush2.msra.mxu0 0.0
      %496 = vmatprep.subr.mxu0 0.0
      %497 = vmatpush2.msra.mxu0 0.0
      %498 = vmatprep.subr.mxu0 0.0
      %499 = vmatpush2.msra.mxu0 0.0
      %500 = vmatprep.subr.mxu0 0.0
      %501 = vmatpush2.msra.mxu0 0.0
      %502 = vmatprep.subr.mxu0 0.0
      %503 = vmatpush2.msra.mxu0 0.0
      %504 = vmatprep.subr.mxu0 0.0
      %505 = vmatpush2.msra.mxu0 0.0
      %506 = vmatprep.subr.mxu0 0.0
      %507 = vmatpush2.msra.mxu0 0.0
      %508 = vmatprep.subr.mxu0 0.0
      %509 = vmatpush2.msra.mxu0 0.0
      %510 = vmatprep.subr.mxu0 0.0
      %511 = vmatpush2.msra.mxu0 0.0
      %512 = vmatprep.subr.mxu0 0.0
      %513 = vmatpush2.msra.mxu0 0.0
      %514 = vmatprep.subr.mxu0 0.0
      %515 = vmatpush2.msra.mxu0 0.0
      %516 = vmatprep.subr.mxu0 0.0
      %517 = vmatpush2.msra.mxu0 0.0
      %518 = vmatprep.subr.mxu0 0.0
      %519 = vmatpush2.msra.mxu0 0.0
      %520 = vmatprep.subr.mxu0 0.0
      %521 = vmatpush2.msra.mxu0 0.0
      %522 = vmatprep.subr.mxu0 0.0
      %523 = vmatpush2.msra.mxu0 0.0
      %524 = vmatprep.subr.mxu0 0.0
      %525 = vmatpush2.msra.mxu0 0.0
      %526 = vmatprep.mubr.f32.mxu0 0.0
      %527 = vmatmul.mubr.f32.gmra.mxu0 %v460
      %v528 = vpop.f32.mrf.mxu0
      %v529 = vadd.f32 0.0, %v528
      %v530 = vpop.f32.mrf.mxu0
      %531 = vdwg.mxu0
      %v533 = vsel %vm348, %v337, 0
      %vm535 = vcmask 1042432
      %v537 = vsel %vm535, %v454, 0
      %539 = vmatprep.subr.mxu0 0.0
      %540 = vmatpush1.msra.mxu0 0.0
      %541 = vmatprep.subr.mxu0 0.0
      %542 = vmatpush1.msra.mxu0 0.0
      %543 = vmatprep.subr.mxu0 0.0
      %544 = vmatpush1.msra.mxu0 0.0
      %545 = vmatprep.subr.mxu0 0.0
      %546 = vmatpush1.msra.mxu0 0.0
      %547 = vmatprep.subr.mxu0 0.0
      %548 = vmatpush1.msra.mxu0 0.0
      %549 = vmatprep.subr.mxu0 0.0
      %550 = vmatpush1.msra.mxu0 0.0
      %551 = vmatprep.subr.mxu0 0.0
      %552 = vmatpush1.msra.mxu0 0.0
      %553 = vmatprep.subr.mxu0 0.0
      %554 = vmatpush1.msra.mxu0 0.0
      %555 = vmatprep.subr.mxu0 0.0
      %556 = vmatpush1.msra.mxu0 0.0
      %557 = vmatprep.subr.mxu0 0.0
      %558 = vmatpush1.msra.mxu0 0.0
      %559 = vmatprep.subr.mxu0 0.0
      %560 = vmatpush1.msra.mxu0 0.0
      %561 = vmatprep.subr.mxu0 0.0
      %562 = vmatpush1.msra.mxu0 0.0
      %563 = vmatprep.subr.mxu0 0.0
      %564 = vmatpush1.msra.mxu0 0.0
      %565 = vmatprep.subr.mxu0 0.0
      %566 = vmatpush1.msra.mxu0 0.0
      %567 = vmatprep.subr.mxu0 0.0
      %568 = vmatpush1.msra.mxu0 0.0
      %569 = vmatprep.subr.mxu0 0.0
      %570 = vmatpush1.msra.mxu0 %v537
      %571 = vmatprep.subr.mxu0 0.0
      %572 = vmatpush2.msra.mxu0 0.0
      %573 = vmatprep.subr.mxu0 0.0
      %574 = vmatpush2.msra.mxu0 0.0
      %575 = vmatprep.subr.mxu0 0.0
      %576 = vmatpush2.msra.mxu0 0.0
      %577 = vmatprep.subr.mxu0 0.0
      %578 = vmatpush2.msra.mxu0 0.0
      %579 = vmatprep.subr.mxu0 0.0
      %580 = vmatpush2.msra.mxu0 0.0
      %581 = vmatprep.subr.mxu0 0.0
      %582 = vmatpush2.msra.mxu0 0.0
      %583 = vmatprep.subr.mxu0 0.0
      %584 = vmatpush2.msra.mxu0 0.0
      %585 = vmatprep.subr.mxu0 0.0
      %586 = vmatpush2.msra.mxu0 0.0
      %587 = vmatprep.subr.mxu0 0.0
      %588 = vmatpush2.msra.mxu0 0.0
      %589 = vmatprep.subr.mxu0 0.0
      %590 = vmatpush2.msra.mxu0 0.0
      %591 = vmatprep.subr.mxu0 0.0
      %592 = vmatpush2.msra.mxu0 0.0
      %593 = vmatprep.subr.mxu0 0.0
      %594 = vmatpush2.msra.mxu0 0.0
      %595 = vmatprep.subr.mxu0 0.0
      %596 = vmatpush2.msra.mxu0 0.0
      %597 = vmatprep.subr.mxu0 0.0
      %598 = vmatpush2.msra.mxu0 0.0
      %599 = vmatprep.subr.mxu0 0.0
      %600 = vmatpush2.msra.mxu0 0.0
      %601 = vmatprep.subr.mxu0 0.0
      %602 = vmatpush2.msra.mxu0 0.0
      %603 = vmatprep.mubr.f32.mxu0 0.0
      %604 = vmatmul.mubr.f32.gmra.mxu0 %v533
      %v605 = vpop.f32.mrf.mxu0
      %v606 = vadd.f32 %v529, %v605
      %v607 = vpop.f32.mrf.mxu0
      %608 = vdwg.mxu0
      %v609 = vld [vmem:[%s8] sm:$0xff]
      %v610 = vld [vmem:[%s8 + $0x8] sm:$0xff]
      %v611 = vld [vmem:[%s8 + $0x10] sm:$0xff]
      %v612 = vld [vmem:[%s8 + $0x18] sm:$0xff]
      %v614 = vsel %vm356, %v451, 0
      %616 = vmatprep.subr.mxu0 0.0
      %617 = vmatpush1.msra.mxu0 0.0
      %618 = vmatprep.subr.mxu0 0.0
      %619 = vmatpush1.msra.mxu0 0.0
      %620 = vmatprep.subr.mxu0 0.0
      %621 = vmatpush1.msra.mxu0 0.0
      %622 = vmatprep.subr.mxu0 0.0
      %623 = vmatpush1.msra.mxu0 0.0
      %624 = vmatprep.subr.mxu0 0.0
      %625 = vmatpush1.msra.mxu0 0.0
      %626 = vmatprep.subr.mxu0 0.0
      %627 = vmatpush1.msra.mxu0 0.0
      %628 = vmatprep.subr.mxu0 0.0
      %629 = vmatpush1.msra.mxu0 0.0
      %630 = vmatprep.subr.mxu0 0.0
      %631 = vmatpush1.msra.mxu0 0.0
      %632 = vmatprep.subr.mxu0 0.0
      %633 = vmatpush1.msra.mxu0 0.0
      %634 = vmatprep.subr.mxu0 0.0
      %635 = vmatpush1.msra.mxu0 0.0
      %636 = vmatprep.subr.mxu0 0.0
      %637 = vmatpush1.msra.mxu0 0.0
      %638 = vmatprep.subr.mxu0 0.0
      %639 = vmatpush1.msra.mxu0 0.0
      %640 = vmatprep.subr.mxu0 0.0
      %641 = vmatpush1.msra.mxu0 %v612
      %642 = vmatprep.subr.mxu0 0.0
      %643 = vmatpush1.msra.mxu0 %v611
      %644 = vmatprep.subr.mxu0 0.0
      %645 = vmatpush1.msra.mxu0 %v610
      %646 = vmatprep.subr.mxu0 0.0
      %647 = vmatpush1.msra.mxu0 %v609
      %648 = vmatprep.subr.mxu0 0.0
      %649 = vmatpush2.msra.mxu0 0.0
      %650 = vmatprep.subr.mxu0 0.0
      %651 = vmatpush2.msra.mxu0 0.0
      %652 = vmatprep.subr.mxu0 0.0
      %653 = vmatpush2.msra.mxu0 0.0
      %654 = vmatprep.subr.mxu0 0.0
      %655 = vmatpush2.msra.mxu0 0.0
      %656 = vmatprep.subr.mxu0 0.0
      %657 = vmatpush2.msra.mxu0 0.0
      %658 = vmatprep.subr.mxu0 0.0
      %659 = vmatpush2.msra.mxu0 0.0
      %660 = vmatprep.subr.mxu0 0.0
      %661 = vmatpush2.msra.mxu0 0.0
      %662 = vmatprep.subr.mxu0 0.0
      %663 = vmatpush2.msra.mxu0 0.0
      %664 = vmatprep.subr.mxu0 0.0
      %665 = vmatpush2.msra.mxu0 0.0
      %666 = vmatprep.subr.mxu0 0.0
      %667 = vmatpush2.msra.mxu0 0.0
      %668 = vmatprep.subr.mxu0 0.0
      %669 = vmatpush2.msra.mxu0 0.0
      %670 = vmatprep.subr.mxu0 0.0
      %671 = vmatpush2.msra.mxu0 0.0
      %672 = vmatprep.subr.mxu0 0.0
      %673 = vmatpush2.msra.mxu0 0.0
      %674 = vmatprep.subr.mxu0 0.0
      %675 = vmatpush2.msra.mxu0 0.0
      %676 = vmatprep.subr.mxu0 0.0
      %677 = vmatpush2.msra.mxu0 0.0
      %678 = vmatprep.subr.mxu0 0.0
      %679 = vmatpush2.msra.mxu0 0.0
      %680 = vmatprep.mubr.f32.mxu0 0.0
      %681 = vmatmul.mubr.f32.gmra.mxu0 %v614
      %v682 = vpop.f32.mrf.mxu0
      %v683 = vadd.f32 0.0, %v682
      %v684 = vpop.f32.mrf.mxu0
      %685 = vdwg.mxu0
      %v686 = vadd.f32 %v606, %v683
      %v687 = vtanh.pop %v686
      %688 = vst.msk [vmem:[#allocation2] sm:$0xff] %vm356, %v687
      %689 = vst.msk [vmem:[#allocation3] sm:$0xff] %vm356, %v451
      %690 = vrot.lane.b32.xlu0 %v451, 32
      %v691 = vpop.permute.xlu0 %690
      %v693 = vsel %vm356, %v687, %v691
      %vm694 = vcmask 523264
      %695 = vst.msk [vmem:[%s327] sm:$0xff] %vm694, %v693
      %p696 = scmp.lt.s32.totalorder %s20, 15
      %s697 = scalar_select %p696, %s20, 15
      %s698 = smul.addr %s697, 8
      %s699 = scalar_lea.vmem %s9, %s698
      // Predicated region
      $region61: #{lmu_sequence.1} parent=55 // pred_check
        %p700 = pneg %p232
      $region62: #{lmu_sequence.1} parent=55 // pred_check_branch
        %702 = sbr.rel (%p700) target = $region64
      $region63: #{lmu_sequence.1} parent=55 // pred_region
        _
      $region64: #{lmu_sequence.1} parent=55 // pred_fallthru
        _
    $region56: #{lmu_sequence.1} parent=5 // pred_fallthru
      _
    %p703 = scmp.le.s32.totalorder 2, %s15
    // Predicated region
    $region65: #{lmu_sequence.1} parent=5 // pred_check
      %p704 = pneg %p703
    $region66: #{lmu_sequence.1} parent=5 // pred_check_branch
      %706 = sbr.rel (%p704) target = $region68
    $region67: #{lmu_sequence.1} parent=5 // pred_region
      %s707 = ssub.s32 %s15, 2
      // Predicated region
      $region69: #{lmu_sequence.1} parent=67 // pred_check
        %p708 = pneg %p238
      $region70: #{lmu_sequence.1} parent=67 // pred_check_branch
        %710 = sbr.rel (%p708) target = $region72
      $region71: #{lmu_sequence.1} parent=67 // pred_region
        %p711 = scmp.lt.s32.totalorder %s21, 15
        %s712 = scalar_select %p711, %s21, 15
        %s713 = smul.addr %s712, 8
        %s714 = scalar_lea.vmem %s9, %s713
      $region72: #{lmu_sequence.1} parent=67 // pred_fallthru
        _
    $region68: #{lmu_sequence.1} parent=5 // pred_fallthru
      _
  $region6: #{lmu_sequence.1} parent=0 // loop_footer
    %s19 = sadd.s32 1, %s15
  $region7: #{lmu_sequence.1} parent=0 // loop_footer_branch
    %14 = sbr.rel target = $region3
  $region8: #{lmu_sequence.1} parent=0 // loop_exit
    _

</llo_original>
